<compile_context>
chip_gen: v7x
topology: tpu7x:2x2x1
jax: 0.10.0
libtpu: 0.0.40
codegen_flags: <defaults>
</compile_context>

<pallas_src>
import jax
import jax.numpy as jnp
import numpy as np
from jax.experimental import pallas as pl

B = 8        # batch (len(x))
F = 81       # input features per sample
H = 64       # hidden width of each sub-net
OUT = 81     # 9*9 output per sample
E = 3        # number of ensemble members

F_PAD = 128      # lane-padded input feature dim
OUT_PAD = 128    # lane-padded output dim
K = E * H        # fused hidden dim (192)


def fused_ensemble_kernel(x_ref, w1_ref, b1_ref, w2_ref, b2_ref, y_ref):
    """Single invocation: whole ensemble as two MXU matmuls.

    x:  (B, F_PAD)         w1: (F_PAD, K)   b1: (1, K)
    w2: (K, OUT_PAD)       b2: (1, OUT_PAD)  ->  y: (B, OUT_PAD)
    """
    h = jnp.dot(x_ref[...], w1_ref[...], preferred_element_type=jnp.float32)
    h = jnp.maximum(h + b1_ref[...], 0.0)
    y_ref[...] = (
        jnp.dot(h, w2_ref[...], preferred_element_type=jnp.float32) + b2_ref[...]
    )


def ensamble_same_net_forward(x, w1, b1, w2, b2):
    """x: (B, F) f32; w1: (E,F,H); b1: (E,1,H); w2: (E,H,OUT); b2: (E,1,OUT).

    Returns (B, 9, 9) f32 = sum_e MLP_e(x)  (the `for net in self.nets: y += net(x)` loop).
    """
    # --- algebraic fusion of the ensemble sum (wrapper-side layout plumbing) ---
    # column index of the fused hidden dim is e*H + h for all of W1/b1/W2.
    w1_cat = jnp.transpose(w1, (1, 0, 2)).reshape(F, K)    # (F, E*H)
    b1_cat = b1.reshape(1, K)                              # (1, E*H)
    w2_cat = w2.reshape(K, OUT)                            # (E*H, OUT)
    b2_sum = jnp.sum(b2, axis=0).reshape(1, OUT)           # (1, OUT)

    # --- lane padding to 128 (zero rows/cols are exact: contribute 0) ---
    x_pad = jnp.pad(x, ((0, 0), (0, F_PAD - F)))
    w1_pad = jnp.pad(w1_cat, ((0, F_PAD - F), (0, 0)))     # (128, 192)
    w2_pad = jnp.pad(w2_cat, ((0, 0), (0, OUT_PAD - OUT))) # (192, 128)
    b2_pad = jnp.pad(b2_sum, ((0, 0), (0, OUT_PAD - OUT))) # (1, 128)

    # Single-invocation kernel: no grid, whole arrays resident in VMEM
    # (total live footprint ~130 KB << VMEM on v5e/v6e/v7x).
    y_pad = pl.pallas_call(
        fused_ensemble_kernel,
        out_shape=jax.ShapeDtypeStruct((B, OUT_PAD), jnp.float32),
    )(x_pad, w1_pad, b1_cat, w2_pad, b2_pad)

    # Reference returns y of shape (len(x), 9, 9); torch would sum into a numpy
    # float64 buffer, we keep float32.
    return y_pad[:, :OUT].reshape(B, 9, 9)


def _reference(x, w1, b1, w2, b2):
    """Unfused per-member reference (matches the original forward() loop)."""
    y = jnp.zeros((B, OUT), jnp.float32)
    for e in range(E):
        h = jnp.maximum(x @ w1[e] + b1[e, 0], 0.0)
        y = y + h @ w2[e] + b2[e, 0]
    return y.reshape(B, 9, 9)


if __name__ == "__main__":
    key = jax.random.PRNGKey(0)
    kx, k1, k2, k3, k4 = jax.random.split(key, 5)

    # Deterministic synthetic inputs / parameters.
    x = jax.random.normal(kx, (B, F), dtype=jnp.float32)
    w1 = jax.random.normal(k1, (E, F, H), dtype=jnp.float32) * 0.1
    b1 = jax.random.normal(k2, (E, 1, H), dtype=jnp.float32) * 0.1
    w2 = jax.random.normal(k3, (E, H, OUT), dtype=jnp.float32) * 0.1
    b2 = jax.random.normal(k4, (E, 1, OUT), dtype=jnp.float32) * 0.1

    fwd = jax.jit(ensamble_same_net_forward)
    y = jax.block_until_ready(fwd(x, w1, b1, w2, b2))

    y_ref = jax.block_until_ready(_reference(x, w1, b1, w2, b2))
    assert y.shape == (B, 9, 9)
    # Fusing the ensemble into one K=E*H matmul changes f32 summation order
    # slightly; well within tolerance.
    np.testing.assert_allclose(np.asarray(y), np.asarray(y_ref), rtol=1e-5, atol=1e-5)

    print("KERNEL_OK")
</pallas_src>

<mosaic_0001>
module attributes {stable_mosaic.version = 11 : i64} {
  func.func @fused_ensemble_kernel(%arg0: memref<8x128xf32, #tpu.memory_space<vmem>>, %arg1: memref<128x192xf32, #tpu.memory_space<vmem>>, %arg2: memref<1x192xf32, #tpu.memory_space<vmem>>, %arg3: memref<192x128xf32, #tpu.memory_space<vmem>>, %arg4: memref<1x128xf32, #tpu.memory_space<vmem>>, %arg5: memref<8x128xf32, #tpu.memory_space<vmem>>) attributes {dimension_semantics = [], scalar_prefetch = 0 : i64, scratch_operands = 0 : i64, tpu.core_type = #tpu.core_type<tc>} {
    %c0 = arith.constant 0 : index
    %c0_0 = arith.constant 0 : index
    %0 = vector.load %arg0[%c0, %c0_0] : memref<8x128xf32, #tpu.memory_space<vmem>>, vector<8x128xf32>
    %c0_1 = arith.constant 0 : index
    %c0_2 = arith.constant 0 : index
    %1 = vector.load %arg1[%c0_1, %c0_2] : memref<128x192xf32, #tpu.memory_space<vmem>>, vector<128x192xf32>
    %cst = arith.constant dense<0.000000e+00> : vector<8x192xf32>
    %2 = tpu.matmul %0, %1, %cst {dimension_numbers = #tpu.dot_dimension_numbers<[1], [0], [0], [1], [0, 0, 1, 1], [], []>} : vector<8x128xf32>, vector<128x192xf32>, vector<8x192xf32> -> vector<8x192xf32>
    %c0_3 = arith.constant 0 : index
    %c0_4 = arith.constant 0 : index
    %3 = vector.load %arg2[%c0_3, %c0_4] : memref<1x192xf32, #tpu.memory_space<vmem>>, vector<1x192xf32>
    %4 = vector.broadcast %3 : vector<1x192xf32> to vector<8x192xf32>
    %5 = arith.addf %2, %4 : vector<8x192xf32>
    %cst_5 = arith.constant 0.000000e+00 : f32
    %6 = vector.broadcast %cst_5 : f32 to vector<8x192xf32>
    %7 = arith.maximumf %5, %6 : vector<8x192xf32>
    %c0_6 = arith.constant 0 : index
    %c0_7 = arith.constant 0 : index
    %8 = vector.load %arg3[%c0_6, %c0_7] : memref<192x128xf32, #tpu.memory_space<vmem>>, vector<192x128xf32>
    %cst_8 = arith.constant dense<0.000000e+00> : vector<8x128xf32>
    %9 = tpu.matmul %7, %8, %cst_8 {dimension_numbers = #tpu.dot_dimension_numbers<[1], [0], [0], [1], [0, 0, 1, 1], [], []>} : vector<8x192xf32>, vector<192x128xf32>, vector<8x128xf32> -> vector<8x128xf32>
    %c0_9 = arith.constant 0 : index
    %c0_10 = arith.constant 0 : index
    %10 = vector.load %arg4[%c0_9, %c0_10] : memref<1x128xf32, #tpu.memory_space<vmem>>, vector<1x128xf32>
    %11 = vector.broadcast %10 : vector<1x128xf32> to vector<8x128xf32>
    %12 = arith.addf %9, %11 : vector<8x128xf32>
    %c0_11 = arith.constant 0 : index
    %c0_12 = arith.constant 0 : index
    %13 = vector.load %arg5[%c0_11, %c0_12] : memref<8x128xf32, #tpu.memory_space<vmem>>, vector<8x128xf32>
    tpu.vector_store %arg5[%c0_11, %c0_12], %12 {strides = array<i32>} : memref<8x128xf32, #tpu.memory_space<vmem>>, vector<8x128xf32>,
    return
  }
}

</mosaic_0001>

<llo_original>
// kernel: ensamble_same_net_forward.1
$region0: #{ensamble_same_net_forward.1}
  #allocation0 [shape = 'u32[]', space=smem, size = 0x4, offset = 0x4, fixed_abs, tag = 'smem constant byte address 0x4 - core index']
  #allocation1 [shape = 'u32[144,128]{1,0:T(1,128)}', space=vmem, size = 0x12000, scoped, tag = 'internal scratch']
  %s0 = inlined_call_operand.vmem [shape: f32[8,128], index: 0, kind: input, shape index: {}]
  %s1 = inlined_call_operand.vmem [shape: f32[128,192], index: 1, kind: input, shape index: {}]
  %s2 = inlined_call_operand.vmem [shape: f32[1,192], index: 2, kind: input, shape index: {}]
  %s3 = inlined_call_operand.vmem [shape: f32[192,128], index: 3, kind: input, shape index: {}]
  %s4 = inlined_call_operand.vmem [shape: f32[1,128], index: 4, kind: input, shape index: {}]
  %s5 = inlined_call_operand.vmem [shape: f32[8,128], index: 5, kind: output, shape index: {}]
  %s6 = sld [smem:[#allocation0]]
  $region30: #{ensamble_same_net_forward.1} parent=0
    _
  %s8 = ssub.s32 1, %s6
  %s9 = scalar_select 0, %s8, %s6
  // Predicated region
  $region2: #{ensamble_same_net_forward.1} parent=0 // pred_check
    _
  $region3: #{ensamble_same_net_forward.1} parent=0 // pred_check_branch
    %11 = sbr.rel (0) target = $region5
  $region4: #{ensamble_same_net_forward.1} parent=0 // pred_region
    _
  $region5: #{ensamble_same_net_forward.1} parent=0 // pred_fallthru
    _
  // Predicated region
  $region6: #{ensamble_same_net_forward.1} parent=0 // pred_check
    _
  $region7: #{ensamble_same_net_forward.1} parent=0 // pred_check_branch
    %13 = sbr.rel (0) target = $region9
  $region8: #{ensamble_same_net_forward.1} parent=0 // pred_region
    _
  $region9: #{ensamble_same_net_forward.1} parent=0 // pred_fallthru
    _
  // Predicated region
  $region10: #{ensamble_same_net_forward.1} parent=0 // pred_check
    _
  $region11: #{ensamble_same_net_forward.1} parent=0 // pred_check_branch
    %15 = sbr.rel (0) target = $region13
  $region12: #{ensamble_same_net_forward.1} parent=0 // pred_region
    _
  $region13: #{ensamble_same_net_forward.1} parent=0 // pred_fallthru
    _
  // Predicated region
  $region14: #{ensamble_same_net_forward.1} parent=0 // pred_check
    _
  $region15: #{ensamble_same_net_forward.1} parent=0 // pred_check_branch
    %17 = sbr.rel (0) target = $region17
  $region16: #{ensamble_same_net_forward.1} parent=0 // pred_region
    _
  $region17: #{ensamble_same_net_forward.1} parent=0 // pred_fallthru
    _
  // Predicated region
  $region18: #{ensamble_same_net_forward.1} parent=0 // pred_check
    _
  $region19: #{ensamble_same_net_forward.1} parent=0 // pred_check_branch
    %19 = sbr.rel (0) target = $region21
  $region20: #{ensamble_same_net_forward.1} parent=0 // pred_region
    _
  $region21: #{ensamble_same_net_forward.1} parent=0 // pred_fallthru
    _
  %v20 = vld [vmem:[%s0] sm:$0xff]
  %v21 = vld [vmem:[%s1] sm:$0xff]
  %v22 = vld [vmem:[%s1 + $0x8] sm:$0xff]
  %v23 = vld [vmem:[%s1 + $0x10] sm:$0xff]
  %v24 = vld [vmem:[%s1 + $0x18] sm:$0xff]
  %v25 = vld [vmem:[%s1 + $0x20] sm:$0xff]
  %v26 = vld [vmem:[%s1 + $0x28] sm:$0xff]
  %v27 = vld [vmem:[%s1 + $0x30] sm:$0xff]
  %v28 = vld [vmem:[%s1 + $0x38] sm:$0xff]
  %v29 = vld [vmem:[%s1 + $0x40] sm:$0xff]
  %v30 = vld [vmem:[%s1 + $0x48] sm:$0xff]
  %v31 = vld [vmem:[%s1 + $0x50] sm:$0xff]
  %v32 = vld [vmem:[%s1 + $0x58] sm:$0xff]
  %v33 = vld [vmem:[%s1 + $0x60] sm:$0xff]
  %v34 = vld [vmem:[%s1 + $0x68] sm:$0xff]
  %v35 = vld [vmem:[%s1 + $0x70] sm:$0xff]
  %v36 = vld [vmem:[%s1 + $0x78] sm:$0xff]
  %v37 = vld [vmem:[%s1 + $0x80] sm:$0xff]
  %v38 = vld [vmem:[%s1 + $0x88] sm:$0xff]
  %v39 = vld [vmem:[%s1 + $0x90] sm:$0xff]
  %v40 = vld [vmem:[%s1 + $0x98] sm:$0xff]
  %v41 = vld [vmem:[%s1 + $0xa0] sm:$0xff]
  %v42 = vld [vmem:[%s1 + $0xa8] sm:$0xff]
  %v43 = vld [vmem:[%s1 + $0xb0] sm:$0xff]
  %v44 = vld [vmem:[%s1 + $0xb8] sm:$0xff]
  %v45 = vld [vmem:[%s1 + $0xc0] sm:$0xff]
  %v46 = vld [vmem:[%s1 + $0xc8] sm:$0xff]
  %v47 = vld [vmem:[%s1 + $0xd0] sm:$0xff]
  %v48 = vld [vmem:[%s1 + $0xd8] sm:$0xff]
  %v49 = vld [vmem:[%s1 + $0xe0] sm:$0xff]
  %v50 = vld [vmem:[%s1 + $0xe8] sm:$0xff]
  %v51 = vld [vmem:[%s1 + $0xf0] sm:$0xff]
  %v52 = vld [vmem:[%s1 + $0xf8] sm:$0xff]
  %v53 = vld [vmem:[%s2] sm:$0x3]
  %v55 = vlaneseq
  %v56 = vshrl.u32 %v55, 7
  %v57 = vsub.s32 0, %v56
  %v58 = vrot.slane %v53, %v57
  %v59 = vlaneseq
  %v60 = vshrl.u32 %v59, 7
  %v61 = vsub.s32 1, %v60
  %v62 = vrot.slane %v53, %v61
  %65 = vmatprep.subr.mxu0 %v22
  %66 = vmatpush1.msra.mxu0 %v21
  %67 = vmatprep.subr.mxu0 %v24
  %68 = vmatpush1.msra.mxu0 %v23
  %69 = vmatprep.subr.mxu0 %v26
  %70 = vmatpush1.msra.mxu0 %v25
  %71 = vmatprep.subr.mxu0 %v28
  %72 = vmatpush1.msra.mxu0 %v27
  %73 = vmatprep.subr.mxu0 %v30
  %74 = vmatpush1.msra.mxu0 %v29
  %75 = vmatprep.subr.mxu0 %v32
  %76 = vmatpush1.msra.mxu0 %v31
  %77 = vmatprep.subr.mxu0 %v34
  %78 = vmatpush1.msra.mxu0 %v33
  %79 = vmatprep.subr.mxu0 %v36
  %80 = vmatpush1.msra.mxu0 %v35
  %81 = vmatprep.subr.mxu0 %v38
  %82 = vmatpush1.msra.mxu0 %v37
  %83 = vmatprep.subr.mxu0 %v40
  %84 = vmatpush1.msra.mxu0 %v39
  %85 = vmatprep.subr.mxu0 %v42
  %86 = vmatpush1.msra.mxu0 %v41
  %87 = vmatprep.subr.mxu0 %v44
  %88 = vmatpush1.msra.mxu0 %v43
  %89 = vmatprep.subr.mxu0 %v46
  %90 = vmatpush1.msra.mxu0 %v45
  %91 = vmatprep.subr.mxu0 %v48
  %92 = vmatpush1.msra.mxu0 %v47
  %93 = vmatprep.subr.mxu0 %v50
  %94 = vmatpush1.msra.mxu0 %v49
  %95 = vmatprep.subr.mxu0 %v52
  %96 = vmatpush1.msra.mxu0 %v51
  %97 = vmatprep.subr.mxu0 0.0
  %98 = vmatpush1.msra.mxu0 0.0
  %99 = vmatprep.subr.mxu0 0.0
  %100 = vmatpush1.msra.mxu0 0.0
  %101 = vmatprep.subr.mxu0 0.0
  %102 = vmatpush1.msra.mxu0 0.0
  %103 = vmatprep.subr.mxu0 0.0
  %104 = vmatpush1.msra.mxu0 0.0
  %105 = vmatprep.subr.mxu0 0.0
  %106 = vmatpush1.msra.mxu0 0.0
  %107 = vmatprep.subr.mxu0 0.0
  %108 = vmatpush1.msra.mxu0 0.0
  %109 = vmatprep.subr.mxu0 0.0
  %110 = vmatpush1.msra.mxu0 0.0
  %111 = vmatprep.subr.mxu0 0.0
  %112 = vmatpush1.msra.mxu0 0.0
  %113 = vmatprep.subr.mxu0 0.0
  %114 = vmatpush1.msra.mxu0 0.0
  %115 = vmatprep.subr.mxu0 0.0
  %116 = vmatpush1.msra.mxu0 0.0
  %117 = vmatprep.subr.mxu0 0.0
  %118 = vmatpush1.msra.mxu0 0.0
  %119 = vmatprep.subr.mxu0 0.0
  %120 = vmatpush1.msra.mxu0 0.0
  %121 = vmatprep.subr.mxu0 0.0
  %122 = vmatpush1.msra.mxu0 0.0
  %123 = vmatprep.subr.mxu0 0.0
  %124 = vmatpush1.msra.mxu0 0.0
  %125 = vmatprep.subr.mxu0 0.0
  %126 = vmatpush1.msra.mxu0 0.0
  %127 = vmatprep.subr.mxu0 0.0
  %128 = vmatpush1.msra.mxu0 0.0
  %129 = vmatprep.mubr.f32.mxu0 0.0
  %130 = vmatmul.mubr.f32.gmra.mrb[0].mxu0 %v20
  %v131 = vpop.f32.mrb[0].mxu0
  %v132 = vadd.f32 %v58, %v131
  %v133 = vpop.f32.mrb[0].mxu0
  %v134 = vadd.f32 %v62, %v133
  %135 = vdwg.mxu0
  %v136 = vmax.f32 %v132, 0.0
  %v137 = vmax.f32 %v134, 0.0
  %v138 = vld [vmem:[%s3] sm:$0xff]
  %v139 = vld [vmem:[%s3 + $0x8] sm:$0xff]
  %v140 = vld [vmem:[%s3 + $0x10] sm:$0xff]
  %v141 = vld [vmem:[%s3 + $0x18] sm:$0xff]
  %v142 = vld [vmem:[%s3 + $0x20] sm:$0xff]
  %v143 = vld [vmem:[%s3 + $0x28] sm:$0xff]
  %v144 = vld [vmem:[%s3 + $0x30] sm:$0xff]
  %v145 = vld [vmem:[%s3 + $0x38] sm:$0xff]
  %v146 = vld [vmem:[%s3 + $0x40] sm:$0xff]
  %v147 = vld [vmem:[%s3 + $0x48] sm:$0xff]
  %v148 = vld [vmem:[%s3 + $0x50] sm:$0xff]
  %v149 = vld [vmem:[%s3 + $0x58] sm:$0xff]
  %v150 = vld [vmem:[%s3 + $0x60] sm:$0xff]
  %v151 = vld [vmem:[%s3 + $0x68] sm:$0xff]
  %v152 = vld [vmem:[%s3 + $0x70] sm:$0xff]
  %v153 = vld [vmem:[%s3 + $0x78] sm:$0xff]
  %v154 = vld [vmem:[%s3 + $0x80] sm:$0xff]
  %v155 = vld [vmem:[%s3 + $0x88] sm:$0xff]
  %v156 = vld [vmem:[%s3 + $0x90] sm:$0xff]
  %v157 = vld [vmem:[%s3 + $0x98] sm:$0xff]
  %v158 = vld [vmem:[%s3 + $0xa0] sm:$0xff]
  %v159 = vld [vmem:[%s3 + $0xa8] sm:$0xff]
  %v160 = vld [vmem:[%s3 + $0xb0] sm:$0xff]
  %v161 = vld [vmem:[%s3 + $0xb8] sm:$0xff]
  %v162 = vld [vmem:[%s4] sm:$0x1]
  %v164 = vlaneseq
  %v165 = vshrl.u32 %v164, 7
  %v166 = vsub.s32 0, %v165
  %v167 = vrot.slane %v162, %v166
  %vm169 = vcmask 523264
  %v171 = vsel %vm169, %v137, 0
  %173 = vmatprep.subr.mxu0 0.0
  %174 = vmatpush1.msra.mxu0 %v138
  %175 = vmatprep.subr.mxu0 0.0
  %176 = vmatpush1.msra.mxu0 %v139
  %177 = vmatprep.subr.mxu0 0.0
  %178 = vmatpush1.msra.mxu0 %v140
  %179 = vmatprep.subr.mxu0 0.0
  %180 = vmatpush1.msra.mxu0 %v141
  %181 = vmatprep.subr.mxu0 0.0
  %182 = vmatpush1.msra.mxu0 %v142
  %183 = vmatprep.subr.mxu0 0.0
  %184 = vmatpush1.msra.mxu0 %v143
  %185 = vmatprep.subr.mxu0 0.0
  %186 = vmatpush1.msra.mxu0 %v144
  %187 = vmatprep.subr.mxu0 0.0
  %188 = vmatpush1.msra.mxu0 %v145
  %189 = vmatprep.subr.mxu0 0.0
  %190 = vmatpush1.msra.mxu0 %v146
  %191 = vmatprep.subr.mxu0 0.0
  %192 = vmatpush1.msra.mxu0 %v147
  %193 = vmatprep.subr.mxu0 0.0
  %194 = vmatpush1.msra.mxu0 %v148
  %195 = vmatprep.subr.mxu0 0.0
  %196 = vmatpush1.msra.mxu0 %v149
  %197 = vmatprep.subr.mxu0 0.0
  %198 = vmatpush1.msra.mxu0 %v150
  %199 = vmatprep.subr.mxu0 0.0
  %200 = vmatpush1.msra.mxu0 %v151
  %201 = vmatprep.subr.mxu0 0.0
  %202 = vmatpush1.msra.mxu0 %v152
  %203 = vmatprep.subr.mxu0 0.0
  %204 = vmatpush1.msra.mxu0 %v153
  %205 = vmatprep.subr.mxu0 0.0
  %206 = vmatpush1.msra.mxu0 %v154
  %207 = vmatprep.subr.mxu0 0.0
  %208 = vmatpush1.msra.mxu0 %v155
  %209 = vmatprep.subr.mxu0 0.0
  %210 = vmatpush1.msra.mxu0 %v156
  %211 = vmatprep.subr.mxu0 0.0
  %212 = vmatpush1.msra.mxu0 %v157
  %213 = vmatprep.subr.mxu0 0.0
  %214 = vmatpush1.msra.mxu0 %v158
  %215 = vmatprep.subr.mxu0 0.0
  %216 = vmatpush1.msra.mxu0 %v159
  %217 = vmatprep.subr.mxu0 0.0
  %218 = vmatpush1.msra.mxu0 %v160
  %219 = vmatprep.subr.mxu0 0.0
  %220 = vmatpush1.msra.mxu0 %v161
  %221 = vmatprep.subr.mxu0 0.0
  %222 = vmatpush1.msra.mxu0 0.0
  %223 = vmatprep.subr.mxu0 0.0
  %224 = vmatpush1.msra.mxu0 0.0
  %225 = vmatprep.subr.mxu0 0.0
  %226 = vmatpush1.msra.mxu0 0.0
  %227 = vmatprep.subr.mxu0 0.0
  %228 = vmatpush1.msra.mxu0 0.0
  %229 = vmatprep.subr.mxu0 0.0
  %230 = vmatpush1.msra.mxu0 0.0
  %231 = vmatprep.subr.mxu0 0.0
  %232 = vmatpush1.msra.mxu0 0.0
  %233 = vmatprep.subr.mxu0 0.0
  %234 = vmatpush1.msra.mxu0 0.0
  %235 = vmatprep.subr.mxu0 0.0
  %236 = vmatpush1.msra.mxu0 0.0
  %237 = vmatprep.mubr.f32.mxu0 %v171
  %238 = vmatmul.mubr.f32.gmra.mrb[0].mxu0 %v136
  %v239 = vpop.f32.mrb[0].mxu0
  %v240 = vadd.f32 %v167, %v239
  %v241 = vpop.f32.mrb[0].mxu0
  %242 = vdwg.mxu0
  %243 = vst [vmem:[%s5] sm:$0xff] %v240
  // Predicated region
  $region22: #{ensamble_same_net_forward.1} parent=0 // pred_check
    _
  $region23: #{ensamble_same_net_forward.1} parent=0 // pred_check_branch
    %245 = sbr.rel (0) target = $region25
  $region24: #{ensamble_same_net_forward.1} parent=0 // pred_region
    _
  $region25: #{ensamble_same_net_forward.1} parent=0 // pred_fallthru
    _
  // Predicated region
  $region26: #{ensamble_same_net_forward.1} parent=0 // pred_check
    _
  $region27: #{ensamble_same_net_forward.1} parent=0 // pred_check_branch
    %247 = sbr.rel (0) target = $region29
  $region28: #{ensamble_same_net_forward.1} parent=0 // pred_region
    _
  $region29: #{ensamble_same_net_forward.1} parent=0 // pred_fallthru
    _

</llo_original>
